<compile_context>
chip_gen: v7x
topology: tpu7x:2x2x1
jax: 0.10.0
libtpu: 0.0.40
codegen_flags: <defaults>
</compile_context>

<pallas_src>
import jax
import jax.numpy as jnp
from jax.experimental import pallas as pl
from jax.experimental.pallas import tpu as pltpu


# ---------------------------------------------------------------------------
# forward: emb.weight[:sl]   (HBM -> HBM DMA, no VMEM staging)
# ---------------------------------------------------------------------------
def _make_prefix_copy_kernel(sl: int, chunk_rows: int, n_chunks: int):
    def kernel(emb_hbm, out_hbm, sems):
        copies = []
        for c in range(n_chunks):            # static Python loop, n_chunks <= 4
            start = c * chunk_rows
            size = min(chunk_rows, sl - start)
            cp = pltpu.make_async_copy(
                emb_hbm.at[pl.ds(start, size), :],
                out_hbm.at[pl.ds(start, size), :],
                sems.at[c],
            )
            cp.start()
            copies.append(cp)
        for cp in copies:                     # start all, then wait all (overlap)
            cp.wait()

    return kernel


def learned_position_embeddings(x, emb_weight):
    """Pallas equivalent of LearnedPositionEmbeddings.forward(x).

    Args:
      x: array whose shape[1] is the sequence length `sl` (values unused).
      emb_weight: (seq_len, model_dim) embedding table.

    Returns:
      (sl, model_dim) array == emb_weight[:sl].
    """
    sl = x.shape[1]
    seq_len, model_dim = emb_weight.shape
    assert sl <= seq_len, "sequence length exceeds embedding table size"
    dtype = emb_weight.dtype

    if sl == 0:                               # guard degenerate case
        return jnp.zeros((0, model_dim), dtype)

    itemsize = jnp.dtype(dtype).itemsize
    total_bytes = sl * model_dim * itemsize
    # One DMA per ~4 MiB, capped at 4 concurrent DMAs; tiny copies use one DMA.
    n_chunks = int(max(1, min(4, total_bytes // (4 * 1024 * 1024), sl)))
    chunk_rows = pl.cdiv(sl, n_chunks)
    n_chunks = pl.cdiv(sl, chunk_rows)        # drop empty trailing chunks

    kernel = _make_prefix_copy_kernel(sl, chunk_rows, n_chunks)

    return pl.pallas_call(
        kernel,
        out_shape=jax.ShapeDtypeStruct((sl, model_dim), dtype),
        in_specs=[pl.BlockSpec(memory_space=pl.ANY)],
        out_specs=pl.BlockSpec(memory_space=pl.ANY),
        scratch_shapes=[pltpu.SemaphoreType.DMA((n_chunks,))],
        cost_estimate=pl.CostEstimate(
            flops=0,
            transcendentals=0,
            bytes_accessed=2 * sl * model_dim * itemsize,
        ),
    )(emb_weight)


# ---------------------------------------------------------------------------
# get_fixed_embedding: emb.weight[[ind]][None]  -> (1, 1, model_dim)
# Single-row HBM -> HBM DMA; index lives in SMEM.
# ---------------------------------------------------------------------------
def _fixed_embedding_kernel(idx_ref, emb_hbm, out_hbm, sem):
    row = idx_ref[0]
    cp = pltpu.make_async_copy(emb_hbm.at[pl.ds(row, 1), :], out_hbm, sem.at[0])
    cp.start()
    cp.wait()


def get_fixed_embedding(ind, emb_weight):
    """Pallas equivalent of LearnedPositionEmbeddings.get_fixed_embedding."""
    seq_len, model_dim = emb_weight.shape
    if isinstance(ind, int):
        assert 0 <= ind < seq_len, "embedding index out of range"
    # Clamp: DMA-level OOB is the only runtime-checked class, keep it in range.
    idx = jnp.clip(jnp.asarray([ind], dtype=jnp.int32), 0, seq_len - 1)

    out = pl.pallas_call(
        _fixed_embedding_kernel,
        out_shape=jax.ShapeDtypeStruct((1, model_dim), emb_weight.dtype),
        in_specs=[
            pl.BlockSpec(memory_space=pltpu.MemorySpace.SMEM),  # index
            pl.BlockSpec(memory_space=pl.ANY),                  # table (HBM)
        ],
        out_specs=pl.BlockSpec(memory_space=pl.ANY),
        scratch_shapes=[pltpu.SemaphoreType.DMA((1,))],
    )(idx, emb_weight)

    return out[None, ...]  # (1, 1, model_dim), matches .unsqueeze(0)


# ---------------------------------------------------------------------------
# Demo / self-check
# ---------------------------------------------------------------------------
if __name__ == "__main__":
    # Small shapes consistent with the module: seq_len=16, model_dim=32,
    # forward input x of shape (batch=2, sl=8) (token ids; values unused).
    seq_len, model_dim = 16, 32
    batch, sl = 2, 8
    init_std = 0.02

    key = jax.random.PRNGKey(0)
    k_emb, k_x = jax.random.split(key)

    # Deterministic parameter init: normal(mean=0, std=0.02), like __init__.
    emb_weight = (init_std *
                  jax.random.normal(k_emb, (seq_len, model_dim), jnp.float32))

    x = jax.random.randint(k_x, (batch, sl), 0, seq_len, dtype=jnp.int32)

    out = jax.block_until_ready(learned_position_embeddings(x, emb_weight))
    assert out.shape == (sl, model_dim)
    assert jnp.allclose(out, emb_weight[:sl])

    # Ragged sl (not a multiple of 8 sublanes): exercises the partial-tile DMA.
    sl2 = 6
    x2 = jax.random.randint(k_x, (batch, sl2), 0, seq_len, dtype=jnp.int32)
    out2 = jax.block_until_ready(learned_position_embeddings(x2, emb_weight))
    assert out2.shape == (sl2, model_dim)
    assert jnp.allclose(out2, emb_weight[:sl2])

    # Single-row lookup path.
    fixed = jax.block_until_ready(get_fixed_embedding(5, emb_weight))
    assert fixed.shape == (1, 1, model_dim)
    assert jnp.allclose(fixed[0, 0], emb_weight[5])

    print("KERNEL_OK")
</pallas_src>

<mosaic_0001>
module attributes {stable_mosaic.version = 11 : i64} {
  func.func @kernel(%arg0: memref<16x32xf32, #tpu.memory_space<any>>, %arg1: memref<8x32xf32, #tpu.memory_space<any>>, %arg2: memref<1x!tpu.dma_semaphore, #tpu.memory_space<semaphore_mem>>) attributes {dimension_semantics = [], scalar_prefetch = 0 : i64, scratch_operands = 1 : i64, tpu.core_type = #tpu.core_type<tc>} {
    %c0_i32 = arith.constant 0 : i32
    %c0_i32_0 = arith.constant 0 : i32
    %c0_i32_1 = arith.constant 0 : i32
    %0 = tpu.memref_slice %arg0[%c0_i32_0, %c0_i32_1] : memref<16x32xf32, #tpu.memory_space<any>> -> memref<8x32xf32, #tpu.memory_space<any>>
    %c0_i32_2 = arith.constant 0 : i32
    %c0_i32_3 = arith.constant 0 : i32
    %1 = tpu.memref_slice %arg1[%c0_i32_2, %c0_i32_3] : memref<8x32xf32, #tpu.memory_space<any>> -> memref<8x32xf32, #tpu.memory_space<any>>
    %2 = tpu.memref_slice %arg2[%c0_i32] : memref<1x!tpu.dma_semaphore, #tpu.memory_space<semaphore_mem>> -> memref<1x!tpu.dma_semaphore, #tpu.memory_space<semaphore_mem>>
    %3 = tpu.memref_squeeze %2 : memref<1x!tpu.dma_semaphore, #tpu.memory_space<semaphore_mem>> -> memref<!tpu.dma_semaphore, #tpu.memory_space<semaphore_mem>>
    tpu.enqueue_dma source(%0 : memref<8x32xf32, #tpu.memory_space<any>>) target(%1 : memref<8x32xf32, #tpu.memory_space<any>>) target_semaphore(%3 : memref<!tpu.dma_semaphore, #tpu.memory_space<semaphore_mem>>)
    %c0_i32_4 = arith.constant 0 : i32
    %c0_i32_5 = arith.constant 0 : i32
    %c0_i32_6 = arith.constant 0 : i32
    %4 = tpu.memref_slice %arg0[%c0_i32_5, %c0_i32_6] : memref<16x32xf32, #tpu.memory_space<any>> -> memref<8x32xf32, #tpu.memory_space<any>>
    %c0_i32_7 = arith.constant 0 : i32
    %c0_i32_8 = arith.constant 0 : i32
    %5 = tpu.memref_slice %arg1[%c0_i32_7, %c0_i32_8] : memref<8x32xf32, #tpu.memory_space<any>> -> memref<8x32xf32, #tpu.memory_space<any>>
    %6 = tpu.memref_slice %arg2[%c0_i32_4] : memref<1x!tpu.dma_semaphore, #tpu.memory_space<semaphore_mem>> -> memref<1x!tpu.dma_semaphore, #tpu.memory_space<semaphore_mem>>
    %7 = tpu.memref_squeeze %6 : memref<1x!tpu.dma_semaphore, #tpu.memory_space<semaphore_mem>> -> memref<!tpu.dma_semaphore, #tpu.memory_space<semaphore_mem>>
    tpu.wait_dma2 semaphore(%7 : memref<!tpu.dma_semaphore, #tpu.memory_space<semaphore_mem>>) src(%4 : memref<8x32xf32, #tpu.memory_space<any>>) dst(%5 : memref<8x32xf32, #tpu.memory_space<any>>)
    return
  }
}

</mosaic_0001>

<llo_original>
// kernel: tpu_custom_call.1
$region0: #{tpu_custom_call.1}
  #allocation0 [shape = 'u32[]', space=smem, size = 0x4, offset = 0x4, fixed_abs, tag = 'smem constant byte address 0x4 - core index']
  #allocation1 [shape = 'u32[144,128]{1,0:T(1,128)}', space=vmem, size = 0x12000, scoped, tag = 'internal scratch']
  #allocation2 [shape = 's32[1]{0}', space=sflag, size = 0x4, scoped, tag = 'scratch operand']
  #allocation3 [shape = 's32[]', space=sflag, size = 0x4, offset = 0, fixed_abs, tag = 'sflag constant byte address 0x0 - dummy sync flag']
  #allocation4 [shape = 'u32[0]{0}', space=smem, size = 0, offset = 0, fixed_abs, tag = 'smem constant byte address 0x0 - null']
  %s0 = inlined_call_operand.hbm [shape: f32[16,32], index: 0, kind: input, shape index: {}]
  %s1 = inlined_call_operand.hbm [shape: f32[8,32], index: 1, kind: output, shape index: {}]
  %s2 = sld [smem:[#allocation0]]
  $region2: #{tpu_custom_call.1} parent=0
    _
  %s4 = ssub.s32 1, %s2
  %s5 = scalar_select 0, %s4, %s2
  %s7 = sshll.u32 1, 14
  %s8 = sxor.u32 4294967295, %s7
  %s11 = sshll.u32 3, 24
  %s12 = sxor.u32 4294967295, %s11
  %s13 = sand.u32 0, %s12
  %s15 = sor.u32 %s13, 0
  %18 = dma.general %s0, 128, %s1, [#allocation2], [#allocation3], [#allocation4], %s15, 0
  %s19 = smul.u32 8, 1
  %s20 = sshll.u32 %s19, 4
  %21 = dma.done [#allocation2], %s20
  %22 = vsyncmov [#allocation2]
  %s23 = vpop.sfrf %22
  %p24 = scmp.eq.s32.totalorder %s23, 0
  %p25 = pneg %p24
  %27 = shalt.err (%p25)

</llo_original>
